<compile_context>
chip_gen: v7x
topology: tpu7x:2x2x1
jax: 0.10.0
libtpu: 0.0.40
codegen_flags: <defaults>
</compile_context>

<pallas_src>
import math
from typing import Callable, Optional

import jax
import jax.numpy as jnp
from jax.experimental import pallas as pl
from jax.experimental.pallas import tpu as pltpu


def hann_window(win_length: int, periodic: bool = True) -> jnp.ndarray:
    """Port of torch.hann_window (periodic=True by default)."""
    if win_length == 1:
        return jnp.ones((1,), dtype=jnp.float32)
    n = jnp.arange(win_length, dtype=jnp.float32)
    denom = float(win_length) if periodic else float(win_length - 1)
    return 0.5 * (1.0 - jnp.cos(2.0 * math.pi * n / denom))


def _round_up(x: int, m: int) -> int:
    return ((x + m - 1) // m) * m


# ----------------------------------------------------------------------------
# Pallas kernel (transposed layout: frames along lanes).
#   re/im = cw/sw @ framesT          (bf16 MXU, f32 accumulate)
#   mag   = sqrt(re^2 + im^2)        (f32 VPU/EUP)
#   red   = fw @ mag                 (MXU reduction: row0 = num, row1 = den)
#   out   = num / den                ((1, tile_f) lane-dense store)
# ----------------------------------------------------------------------------
def _centroid_kernel(cw_ref, sw_ref, fw_ref, x_ref, o_ref):
    # cw_ref, sw_ref: (n_freqs_pad, n_fft) bf16   window-folded cos / -sin rows
    # fw_ref:         (8, n_freqs_pad)     f32    row0 = freqs (Hz), row1 = ones
    # x_ref:          (1, n_fft, tile_f)   bf16   frames, frame index on lanes
    # o_ref:          (1, 1, 1, tile_f)    f32    spectral centroid per frame
    x = x_ref[0]                                                   # (n_fft, tile_f)
    re = jnp.dot(cw_ref[...], x, preferred_element_type=jnp.float32)
    im = jnp.dot(sw_ref[...], x, preferred_element_type=jnp.float32)
    mag = jnp.sqrt(re * re + im * im)                              # (n_freqs_pad, tile_f) f32
    red = jnp.dot(fw_ref[...], mag, preferred_element_type=jnp.float32)  # (8, tile_f)
    # Padded frame columns are all-zero -> 0/0 = NaN there; they are sliced off
    # in the wrapper (matches torch semantics of NaN for all-zero frames).
    cent = red[0:1, :] / red[1:2, :]                               # (1, tile_f)
    o_ref[0, 0] = cent.astype(o_ref.dtype)


class SpectralCentroid:
    """JAX/Pallas re-implementation of torchaudio.transforms.SpectralCentroid."""

    def __init__(
        self,
        sample_rate: int,
        n_fft: int = 400,
        win_length: Optional[int] = None,
        hop_length: Optional[int] = None,
        pad: int = 0,
        window_fn: Callable[..., jnp.ndarray] = hann_window,
        wkwargs: Optional[dict] = None,
    ) -> None:
        self.sample_rate = sample_rate
        self.n_fft = n_fft
        self.win_length = win_length if win_length is not None else n_fft
        self.hop_length = hop_length if hop_length is not None else self.win_length // 2
        self.pad = pad

        window = window_fn(self.win_length) if wkwargs is None else window_fn(self.win_length, **wkwargs)
        window = jnp.asarray(window, dtype=jnp.float32)
        # torch.stft zero-pads the window (centered) up to n_fft.
        left = (self.n_fft - self.win_length) // 2
        right = self.n_fft - self.win_length - left
        self.window = jnp.pad(window, (left, right))

        n_freqs = self.n_fft // 2 + 1
        self.n_freqs = n_freqs
        self.n_freqs_pad = _round_up(n_freqs, 8)      # sublane-aligned M dim

        k = jnp.arange(n_freqs, dtype=jnp.float32)[:, None]         # (n_freqs, 1)
        n = jnp.arange(self.n_fft, dtype=jnp.float32)[None, :]      # (1, n_fft)
        ang = 2.0 * math.pi * k * n / float(self.n_fft)
        # Fold the analysis window into the (transposed) DFT matrices; pad extra
        # freq rows with zeros (contribute nothing); store bf16 for the MXU.
        cw = jnp.cos(ang) * self.window[None, :]
        sw = -jnp.sin(ang) * self.window[None, :]
        pad_rows = self.n_freqs_pad - n_freqs
        self.cos_mat = jnp.pad(cw, ((0, pad_rows), (0, 0))).astype(jnp.bfloat16)
        self.sin_mat = jnp.pad(sw, ((0, pad_rows), (0, 0))).astype(jnp.bfloat16)

        # torchaudio: freqs = linspace(0, sample_rate // 2, 1 + n_fft // 2)
        self.freqs = jnp.linspace(0.0, float(sample_rate // 2), n_freqs, dtype=jnp.float32)
        fw = jnp.zeros((8, self.n_freqs_pad), dtype=jnp.float32)
        fw = fw.at[0, :n_freqs].set(self.freqs)   # numerator weights
        fw = fw.at[1, :n_freqs].set(1.0)          # denominator weights
        self.freq_weights = fw

    # -- padding (plain JAX) ---------------------------------------------------
    def _pad_waveform(self, waveform: jnp.ndarray):
        shape = waveform.shape
        x = waveform.reshape(-1, shape[-1]).astype(jnp.float32)
        if self.pad > 0:
            x = jnp.pad(x, ((0, 0), (self.pad, self.pad)))
        half = self.n_fft // 2
        x = jnp.pad(x, ((0, 0), (half, half)), mode="reflect")      # center=True
        n_frames = 1 + (x.shape[-1] - self.n_fft) // self.hop_length
        return x, n_frames

    def __call__(self, waveform: jnp.ndarray) -> jnp.ndarray:
        shape = waveform.shape
        x, n_frames = self._pad_waveform(waveform)
        batch = x.shape[0]

        # Frame-tile size: large (HBM roofline) but capped so the grid keeps
        # >= ~4 steps -> both TensorCores stay busy on v7x for short batches.
        tiles_target = max(1, -(-4 // batch))
        tile_f = min(512, max(128, _round_up(-(-n_frames // tiles_target), 128)))
        f_pad = _round_up(n_frames, tile_f)
        n_tiles = f_pad // tile_f

        # Zero-extend so every (padded) frame index gathers in-bounds.
        need = (f_pad - 1) * self.hop_length + self.n_fft
        if x.shape[-1] < need:
            x = jnp.pad(x, ((0, 0), (0, need - x.shape[-1])))
        x = x.astype(jnp.bfloat16)

        # Overlapped, transposed framing (frame index on the lane axis).
        # TODO(synk): with hop < n_fft this still materializes an (n_fft/hop)x
        # expanded frame array in HBM; an in-kernel manual-DMA framer
        # (memory_space=pl.ANY + make_async_copy of contiguous spans) would cut
        # that traffic further.
        idx = (jnp.arange(self.n_fft)[:, None]
               + self.hop_length * jnp.arange(f_pad)[None, :])
        frames_t = x[:, idx]                                         # (B, n_fft, f_pad) bf16

        n_fft, nf_pad = self.n_fft, self.n_freqs_pad
        total = batch * f_pad
        cost = pl.CostEstimate(
            flops=4 * n_fft * nf_pad * total + 4 * 8 * nf_pad * total + 6 * nf_pad * total,
            transcendentals=nf_pad * total,
            bytes_accessed=2 * total * n_fft + 2 * 2 * nf_pad * n_fft + 4 * total,
        )

        out = pl.pallas_call(
            _centroid_kernel,
            out_shape=jax.ShapeDtypeStruct((batch, n_tiles, 1, tile_f), jnp.float32),
            grid=(batch, n_tiles),
            in_specs=[
                pl.BlockSpec((nf_pad, n_fft), lambda b, j: (0, 0)),        # cos (resident)
                pl.BlockSpec((nf_pad, n_fft), lambda b, j: (0, 0)),        # sin (resident)
                pl.BlockSpec((8, nf_pad), lambda b, j: (0, 0)),            # freq weights
                pl.BlockSpec((1, n_fft, tile_f), lambda b, j: (b, 0, j)),  # frame tile
            ],
            out_specs=pl.BlockSpec((1, 1, 1, tile_f), lambda b, j: (b, j, 0, 0)),
            compiler_params=pltpu.CompilerParams(
                dimension_semantics=("parallel", "parallel"),
                vmem_limit_bytes=32 * 1024 * 1024,
            ),
            cost_estimate=cost,
        )(self.cos_mat, self.sin_mat, self.freq_weights, frames_t)

        cent = out.reshape(batch, f_pad)[:, :n_frames]
        return cent.reshape(shape[:-1] + (n_frames,)).astype(waveform.dtype)


# ----------------------------------------------------------------------------
# Pure-JAX reference (rfft-based) for validation.
# ----------------------------------------------------------------------------
def _reference_centroid(transform: SpectralCentroid, waveform: jnp.ndarray) -> jnp.ndarray:
    shape = waveform.shape
    x = waveform.reshape(-1, shape[-1]).astype(jnp.float32)
    if transform.pad > 0:
        x = jnp.pad(x, ((0, 0), (transform.pad, transform.pad)))
    half = transform.n_fft // 2
    x = jnp.pad(x, ((0, 0), (half, half)), mode="reflect")
    n_frames = 1 + (x.shape[-1] - transform.n_fft) // transform.hop_length
    idx = (jnp.arange(n_frames)[:, None] * transform.hop_length
           + jnp.arange(transform.n_fft)[None, :])
    frames = x[:, idx] * transform.window[None, None, :]
    spec = jnp.abs(jnp.fft.rfft(frames, n=transform.n_fft, axis=-1))
    cent = (jnp.sum(spec * transform.freqs[None, None, :], axis=-1)
            / jnp.sum(spec, axis=-1))
    return cent.reshape(shape[:-1] + (n_frames,))


if __name__ == "__main__":
    # Small, module-consistent shapes: (batch=2, channels=3, time=512),
    # n_fft=64 -> 33 freq bins, hop=32 -> 17 frames.
    sample_rate = 8000
    n_fft = 64
    hop_length = 32
    time = 512

    key = jax.random.PRNGKey(0)
    waveform = jax.random.normal(key, (2, 3, time), dtype=jnp.float32)

    transform = SpectralCentroid(sample_rate, n_fft=n_fft, hop_length=hop_length)
    centroid = jax.block_until_ready(transform(waveform))

    n_frames = 1 + time // hop_length
    assert centroid.shape == (2, 3, n_frames), centroid.shape
    assert centroid.dtype == jnp.float32
    assert bool(jnp.all(jnp.isfinite(centroid)))
    assert bool(jnp.all(centroid >= 0.0)) and bool(jnp.all(centroid <= sample_rate / 2))

    ref = _reference_centroid(transform, waveform)
    rel_err = jnp.max(jnp.abs(centroid - ref) / (jnp.abs(ref) + 1e-3))
    assert bool(rel_err < 3e-2), float(rel_err)

    print("KERNEL_OK")
</pallas_src>

<mosaic_0001>
module attributes {stable_mosaic.version = 11 : i64} {
  func.func @_centroid_kernel(%arg0: i32, %arg1: i32, %arg2: memref<40x64xbf16, #tpu.memory_space<vmem>>, %arg3: memref<40x64xbf16, #tpu.memory_space<vmem>>, %arg4: memref<8x40xf32, #tpu.memory_space<vmem>>, %arg5: memref<1x64x128xbf16, #tpu.memory_space<vmem>>, %arg6: memref<1x1x1x128xf32, #tpu.memory_space<vmem>>) attributes {dimension_semantics = [#tpu.dimension_semantics<parallel>, #tpu.dimension_semantics<parallel>], iteration_bounds = array<i64: 6, 1>, scalar_prefetch = 0 : i64, scratch_operands = 0 : i64, tpu.core_type = #tpu.core_type<tc>, window_params = [{pipeline_mode = #tpu.pipeline_mode<synchronous>, transform_indices = @transform_0, window_bounds = array<i64: 40, 64>}, {pipeline_mode = #tpu.pipeline_mode<synchronous>, transform_indices = @transform_1, window_bounds = array<i64: 40, 64>}, {pipeline_mode = #tpu.pipeline_mode<synchronous>, transform_indices = @transform_2, window_bounds = array<i64: 8, 40>}, {transform_indices = @transform_3, window_bounds = array<i64: 1, 64, 128>}, {transform_indices = @transform_4, window_bounds = array<i64: 1, 1, 1, 128>}]} {
    %c0 = arith.constant 0 : index
    %c0_0 = arith.constant 0 : index
    %c0_1 = arith.constant 0 : index
    %0 = vector.load %arg5[%c0, %c0_0, %c0_1] : memref<1x64x128xbf16, #tpu.memory_space<vmem>>, vector<1x64x128xbf16>
    %1 = vector.shape_cast %0 : vector<1x64x128xbf16> to vector<64x128xbf16>
    %c0_2 = arith.constant 0 : index
    %c0_3 = arith.constant 0 : index
    %2 = vector.load %arg2[%c0_2, %c0_3] : memref<40x64xbf16, #tpu.memory_space<vmem>>, vector<40x64xbf16>
    %cst = arith.constant dense<0.000000e+00> : vector<40x128xf32>
    %3 = tpu.matmul %2, %1, %cst {dimension_numbers = #tpu.dot_dimension_numbers<[1], [0], [0], [1], [0, 0, 1, 1], [], []>} : vector<40x64xbf16>, vector<64x128xbf16>, vector<40x128xf32> -> vector<40x128xf32>
    %c0_4 = arith.constant 0 : index
    %c0_5 = arith.constant 0 : index
    %4 = vector.load %arg3[%c0_4, %c0_5] : memref<40x64xbf16, #tpu.memory_space<vmem>>, vector<40x64xbf16>
    %cst_6 = arith.constant dense<0.000000e+00> : vector<40x128xf32>
    %5 = tpu.matmul %4, %1, %cst_6 {dimension_numbers = #tpu.dot_dimension_numbers<[1], [0], [0], [1], [0, 0, 1, 1], [], []>} : vector<40x64xbf16>, vector<64x128xbf16>, vector<40x128xf32> -> vector<40x128xf32>
    %6 = arith.mulf %3, %3 : vector<40x128xf32>
    %7 = arith.mulf %5, %5 : vector<40x128xf32>
    %8 = arith.addf %6, %7 : vector<40x128xf32>
    %9 = math.sqrt %8 : vector<40x128xf32>
    %c0_7 = arith.constant 0 : index
    %c0_8 = arith.constant 0 : index
    %10 = vector.load %arg4[%c0_7, %c0_8] : memref<8x40xf32, #tpu.memory_space<vmem>>, vector<8x40xf32>
    %cst_9 = arith.constant dense<0.000000e+00> : vector<8x128xf32>
    %11 = tpu.matmul %10, %9, %cst_9 {dimension_numbers = #tpu.dot_dimension_numbers<[1], [0], [0], [1], [0, 0, 1, 1], [], []>} : vector<8x40xf32>, vector<40x128xf32>, vector<8x128xf32> -> vector<8x128xf32>
    %12 = vector.extract_strided_slice %11 {offsets = [0, 0], sizes = [1, 128], strides = [1, 1]} : vector<8x128xf32> to vector<1x128xf32>
    %13 = vector.extract_strided_slice %11 {offsets = [1, 0], sizes = [1, 128], strides = [1, 1]} : vector<8x128xf32> to vector<1x128xf32>
    %14 = arith.divf %12, %13 : vector<1x128xf32>
    %c0_10 = arith.constant 0 : index
    %c0_11 = arith.constant 0 : index
    %c0_12 = arith.constant 0 : index
    %c0_13 = arith.constant 0 : index
    %15 = vector.load %arg6[%c0_10, %c0_11, %c0_12, %c0_13] : memref<1x1x1x128xf32, #tpu.memory_space<vmem>>, vector<1x1x1x128xf32>
    %16 = vector.shape_cast %15 : vector<1x1x1x128xf32> to vector<1x128xf32>
    %17 = vector.shape_cast %14 : vector<1x128xf32> to vector<1x1x1x128xf32>
    tpu.vector_store %arg6[%c0_10, %c0_11, %c0_12, %c0_13], %17 {strides = array<i32>} : memref<1x1x1x128xf32, #tpu.memory_space<vmem>>, vector<1x1x1x128xf32>,
    return
  }
  func.func @transform_0(%arg0: i32, %arg1: i32) -> (i32, i32) {
    %c0_i32 = arith.constant 0 : i32
    %c0_i32_0 = arith.constant 0 : i32
    %c0_i32_1 = arith.constant 0 : i32
    return %c0_i32, %c0_i32_0 : i32, i32
  }
  func.func @transform_1(%arg0: i32, %arg1: i32) -> (i32, i32) {
    %c0_i32 = arith.constant 0 : i32
    %c0_i32_0 = arith.constant 0 : i32
    %c0_i32_1 = arith.constant 0 : i32
    return %c0_i32, %c0_i32_0 : i32, i32
  }
  func.func @transform_2(%arg0: i32, %arg1: i32) -> (i32, i32) {
    %c0_i32 = arith.constant 0 : i32
    %c0_i32_0 = arith.constant 0 : i32
    %c0_i32_1 = arith.constant 0 : i32
    return %c0_i32, %c0_i32_0 : i32, i32
  }
  func.func @transform_3(%arg0: i32, %arg1: i32) -> (i32, i32, i32) {
    %c0_i32 = arith.constant 0 : i32
    %c0_i32_0 = arith.constant 0 : i32
    return %arg0, %c0_i32, %arg1 : i32, i32, i32
  }
  func.func @transform_4(%arg0: i32, %arg1: i32) -> (i32, i32, i32, i32) {
    %c0_i32 = arith.constant 0 : i32
    %c0_i32_0 = arith.constant 0 : i32
    %c0_i32_1 = arith.constant 0 : i32
    return %arg0, %arg1, %c0_i32, %c0_i32_0 : i32, i32, i32, i32
  }
}

</mosaic_0001>

<llo_original>
// kernel: tpu_custom_call.1
$region0: #{tpu_custom_call.1}
  #allocation0 [shape = 'u32[]', space=smem, size = 0x4, offset = 0x4, fixed_abs, tag = 'smem constant byte address 0x4 - core index']
  #allocation1 [shape = 'u32[144,128]{1,0:T(1,128)}', space=vmem, size = 0x12000, scoped, tag = 'internal scratch']
  %s0 = inlined_call_operand.hbm [shape: bf16[40,64], index: 0, kind: input, shape index: {}]
  %s1 = inlined_call_operand.hbm [shape: bf16[40,64], index: 1, kind: input, shape index: {}]
  %s2 = inlined_call_operand.hbm [shape: f32[8,40], index: 2, kind: input, shape index: {}]
  %s3 = inlined_call_operand.hbm [shape: bf16[6,64,128], index: 3, kind: input, shape index: {}]
  %s4 = inlined_call_operand.hbm [shape: f32[6,1,1,128], index: 4, kind: output, shape index: {}]
  %s5 = sld [smem:[#allocation0]]
  $region65: #{tpu_custom_call.1} parent=0
    _
  %s7 = ssub.s32 1, %s5
  %s8 = scalar_select 0, %s7, %s5
  $region1: #{tpu_custom_call.1} parent=0
    #allocation2 [shape = 'u8[10240]{0}', space=vmem, size = 0x2800, scoped, tag = 'input window, operand 0, single buffered']
    #allocation3 [shape = 's32[2]{0}', space=sflag, size = 0x8, scoped, tag = 'scoped memory for tpu_custom_call.1']
    #allocation4 [shape = 's32[2]{0}', space=sflag, size = 0x8, scoped, tag = 'scoped memory for tpu_custom_call.1']
    #allocation5 [shape = 'u8[10240]{0}', space=vmem, size = 0x2800, scoped, tag = 'input window, operand 1, single buffered']
    #allocation6 [shape = 's32[1]{0}', space=sflag, size = 0x4, scoped, tag = 'scoped memory for tpu_custom_call.1']
    #allocation7 [shape = 'u8[4096]{0}', space=vmem, size = 0x1000, scoped, tag = 'input window, operand 2, single buffered']
    #allocation8 [shape = 'u8[32768]{0}', space=vmem, size = 0x8000, scoped, tag = 'input window, operand 3']
    #allocation9 [shape = 's32[2]{0}', space=sflag, size = 0x8, scoped, tag = 'scoped memory for tpu_custom_call.1']
    #allocation10 [shape = 'u8[1024]{0}', space=vmem, size = 0x400, scoped, tag = 'output window, operand 0']
    %9 = vsyncpa [#allocation3], 0
    %10 = vsyncpa [#allocation6], 0
    %11 = vsyncpa [#allocation9], 0
    %s12 = scalar_lea.sflag [#allocation9], 1
    %13 = vsyncpa %s12, 0
    %14 = vsyncpa [#allocation4], 0
    %s15 = scalar_lea.sflag [#allocation4], 1
    %16 = vsyncpa %s15, 0
    loop: start=0, step=1, limit=8
    $region2: #{tpu_custom_call.1} parent=1 // loop_pre_header
      _
    $region3: #{tpu_custom_call.1} parent=1 // loop_header
      %s18 = sphi 0, %s22
      %p19 = scmp.ge.s32.totalorder %s18, 8
      %s25 = sphi 0, %s37
      %s26 = sphi 0, %s33
      %s27 = sphi 0, %s25
      %s28 = sphi 0, %s26
      %s29 = sphi 0, %s27
      %s30 = sphi 0, %s28
      %s38 = sphi 0, %s38
      %s40 = sphi 0, %s38
      %s41 = sphi 0, %s40
      %s55 = sphi 0, %s41
      %s59 = sphi 0, %s59
      %s61 = sphi 0, %s59
      %s62 = sphi 0, %s61
      %s76 = sphi 0, %s62
      %s80 = sphi 0, %s80
      %s82 = sphi 0, %s80
      %s83 = sphi 0, %s82
      %s97 = sphi 0, %s83
      %s105 = sphi 0, %s107
      %s108 = sphi 0, %s105
      %s109 = sphi 0, %s108
      %s125 = sphi 0, %s109
      %s133 = sphi 0, %s135
      %s136 = sphi 0, %s133
      %s137 = sphi 0, %s136
      %s153 = sphi 0, %s137
    $region4: #{tpu_custom_call.1} parent=1 // loop_header_branch
      %21 = sbr.rel (%p19) target = $region8
    $region5: #{tpu_custom_call.1} parent=1 // loop_body
      %s23 = ssub.s32 %s18, 1
      %s24 = ssub.s32 %s18, 2
      %s31 = sadd.s32 1, %s26
      %p32 = scmp.ge.s32.totalorder %s31, 1
      %s33 = scalar_select %p32, 0, %s31
      %s34 = sadd.s32 1, %s25
      %s35 = scalar_select %p32, %s34, %s25
      %p36 = scmp.ge.s32.totalorder %s35, 6
      %s37 = scalar_select %p36, 0, %s35
      %s39 = sadd.s32 %s38, 1
      %p42 = scmp.eq.s32.totalorder %s18, 5
      %p43 = scmp.ne.s32.totalorder %s38, %s40
      %p44 = scmp.eq.s32.totalorder %s18, 0
      %p45 = por %p43, %p44
      %p46 = scmp.ne.s32.totalorder %s38, %s40
      %p47 = scmp.eq.s32.totalorder %s23, 5
      %p48 = por %p46, %p47
      %p49 = scmp.ne.s32.totalorder %s40, %s41
      %p50 = scmp.eq.s32.totalorder %s23, 0
      %p51 = por %p49, %p50
      %p52 = scmp.ne.s32.totalorder %s40, %s41
      %p53 = scmp.eq.s32.totalorder %s24, 5
      %p54 = por %p52, %p53
      %p56 = scmp.ne.s32.totalorder %s41, %s55
      %p57 = scmp.eq.s32.totalorder %s24, 0
      %p58 = por %p56, %p57
      %s60 = sadd.s32 %s59, 1
      %p63 = scmp.eq.s32.totalorder %s18, 5
      %p64 = scmp.ne.s32.totalorder %s59, %s61
      %p65 = scmp.eq.s32.totalorder %s18, 0
      %p66 = por %p64, %p65
      %p67 = scmp.ne.s32.totalorder %s59, %s61
      %p68 = scmp.eq.s32.totalorder %s23, 5
      %p69 = por %p67, %p68
      %p70 = scmp.ne.s32.totalorder %s61, %s62
      %p71 = scmp.eq.s32.totalorder %s23, 0
      %p72 = por %p70, %p71
      %p73 = scmp.ne.s32.totalorder %s61, %s62
      %p74 = scmp.eq.s32.totalorder %s24, 5
      %p75 = por %p73, %p74
      %p77 = scmp.ne.s32.totalorder %s62, %s76
      %p78 = scmp.eq.s32.totalorder %s24, 0
      %p79 = por %p77, %p78
      %s81 = sadd.s32 %s80, 1
      %p84 = scmp.eq.s32.totalorder %s18, 5
      %p85 = scmp.ne.s32.totalorder %s80, %s82
      %p86 = scmp.eq.s32.totalorder %s18, 0
      %p87 = por %p85, %p86
      %p88 = scmp.ne.s32.totalorder %s80, %s82
      %p89 = scmp.eq.s32.totalorder %s23, 5
      %p90 = por %p88, %p89
      %p91 = scmp.ne.s32.totalorder %s82, %s83
      %p92 = scmp.eq.s32.totalorder %s23, 0
      %p93 = por %p91, %p92
      %p94 = scmp.ne.s32.totalorder %s82, %s83
      %p95 = scmp.eq.s32.totalorder %s24, 5
      %p96 = por %p94, %p95
      %p98 = scmp.ne.s32.totalorder %s83, %s97
      %p99 = scmp.eq.s32.totalorder %s24, 0
      %p100 = por %p98, %p99
      %s101 = ssub.s32 %s25, %s37
      %s102 = ssub.s32 %s26, %s33
      %s103 = sor.u32 %s101, %s102
      %p104 = scmp.eq.s32.totalorder %s103, 0
      %s106 = sadd.s32 %s105, 1
      %s107 = scalar_select %p104, %s105, %s106
      %p110 = pneg %p104
      %p111 = scmp.eq.s32.totalorder %s18, 5
      %p112 = por %p110, %p111
      %p113 = scmp.ne.s32.totalorder %s105, %s108
      %p114 = scmp.eq.s32.totalorder %s18, 0
      %p115 = por %p113, %p114
      %p116 = scmp.ne.s32.totalorder %s105, %s108
      %p117 = scmp.eq.s32.totalorder %s23, 5
      %p118 = por %p116, %p117
      %p119 = scmp.ne.s32.totalorder %s108, %s109
      %p120 = scmp.eq.s32.totalorder %s23, 0
      %p121 = por %p119, %p120
      %p122 = scmp.ne.s32.totalorder %s108, %s109
      %p123 = scmp.eq.s32.totalorder %s24, 5
      %p124 = por %p122, %p123
      %p126 = scmp.ne.s32.totalorder %s109, %s125
      %p127 = scmp.eq.s32.totalorder %s24, 0
      %p128 = por %p126, %p127
      %s129 = ssub.s32 %s25, %s37
      %s130 = ssub.s32 %s26, %s33
      %s131 = sor.u32 %s129, %s130
      %p132 = scmp.eq.s32.totalorder %s131, 0
      %s134 = sadd.s32 %s133, 1
      %s135 = scalar_select %p132, %s133, %s134
      %p138 = pneg %p132
      %p139 = scmp.eq.s32.totalorder %s18, 5
      %p140 = por %p138, %p139
      %p141 = scmp.ne.s32.totalorder %s133, %s136
      %p142 = scmp.eq.s32.totalorder %s18, 0
      %p143 = por %p141, %p142
      %p144 = scmp.ne.s32.totalorder %s133, %s136
      %p145 = scmp.eq.s32.totalorder %s23, 5
      %p146 = por %p144, %p145
      %p147 = scmp.ne.s32.totalorder %s136, %s137
      %p148 = scmp.eq.s32.totalorder %s23, 0
      %p149 = por %p147, %p148
      %p150 = scmp.ne.s32.totalorder %s136, %s137
      %p151 = scmp.eq.s32.totalorder %s24, 5
      %p152 = por %p150, %p151
      %p154 = scmp.ne.s32.totalorder %s137, %s153
      %p155 = scmp.eq.s32.totalorder %s24, 0
      %p156 = por %p154, %p155
      %p157 = scmp.le.s32.totalorder 1, %s18
      %p158 = scmp.lt.s32.totalorder %s18, 7
      %p159 = pnand %p157, %p158
      %p160 = pneg %p159
      // Predicated region
      $region9: #{tpu_custom_call.1} parent=5 // pred_check
        _
      $region10: #{tpu_custom_call.1} parent=5 // pred_check_branch
        %162 = sbr.rel (%p159) target = $region12
      $region11: #{tpu_custom_call.1} parent=5 // pred_region
        %s163 = ssub.s32 %s18, 1
        // Predicated region
        $region13: #{tpu_custom_call.1} parent=11 // pred_check
          %p164 = pneg %p51
        $region14: #{tpu_custom_call.1} parent=11 // pred_check_branch
          %166 = sbr.rel (%p164) target = $region16
        $region15: #{tpu_custom_call.1} parent=11 // pred_region
          %s168 = ssub.s32 320, 320
          %169 = vsyncadd [#allocation3], %s168
          %s170 = sshll.u32 [#allocation2], 4
          %s171 = int_to_ptr.vmem [resolvable:$true] %s170
          %176 = dma.hbm_to_vmem [thread:$0]  %s0, 320, %s171, [#allocation3], 64, 64, 4
        $region16: #{tpu_custom_call.1} parent=11 // pred_fallthru
          _
        // Predicated region
        $region17: #{tpu_custom_call.1} parent=11 // pred_check
          %p177 = pneg %p72
        $region18: #{tpu_custom_call.1} parent=11 // pred_check_branch
          %179 = sbr.rel (%p177) target = $region20
        $region19: #{tpu_custom_call.1} parent=11 // pred_region
          %s181 = ssub.s32 320, 320
          %182 = vsyncadd [#allocation6], %s181
          %s183 = sshll.u32 [#allocation5], 4
          %s184 = int_to_ptr.vmem [resolvable:$true] %s183
          %189 = dma.hbm_to_vmem [thread:$0]  %s1, 320, %s184, [#allocation6], 64, 64, 4
        $region20: #{tpu_custom_call.1} parent=11 // pred_fallthru
          _
        // Predicated region
        $region21: #{tpu_custom_call.1} parent=11 // pred_check
          %p190 = pneg %p93
        $region22: #{tpu_custom_call.1} parent=11 // pred_check_branch
          %192 = sbr.rel (%p190) target = $region24
        $region23: #{tpu_custom_call.1} parent=11 // pred_region
          %s194 = ssub.s32 128, 128
          %195 = vsyncadd [#allocation6], %s194
          %s197 = sshll.u32 [#allocation7], 4
          %s198 = int_to_ptr.vmem [resolvable:$true] %s197
          %200 = dma.hbm_to_vmem [thread:$0]  %s2, 128, %s198, [#allocation6]
        $region24: #{tpu_custom_call.1} parent=11 // pred_fallthru
          _
      $region12: #{tpu_custom_call.1} parent=5 // pred_fallthru
        _
      %p201 = scmp.lt.s32.totalorder %s18, 6
      // Predicated region
      $region25: #{tpu_custom_call.1} parent=5 // pred_check
        %p202 = pneg %p201
      $region26: #{tpu_custom_call.1} parent=5 // pred_check_branch
        %204 = sbr.rel (%p202) target = $region28
      $region27: #{tpu_custom_call.1} parent=5 // pred_region
        // Predicated region
        $region29: #{tpu_custom_call.1} parent=27 // pred_check
          %p205 = pneg %p115
        $region30: #{tpu_custom_call.1} parent=27 // pred_check_branch
          %207 = sbr.rel (%p205) target = $region32
        $region31: #{tpu_custom_call.1} parent=27 // pred_region
          %s208 = sand.u32 %s105, 1
          %s209 = scalar_lea.sflag [#allocation9], %s208
          %s210 = sand.u32 %s105, 1
          %s211 = smul.addr %s210, 32
          %s212 = scalar_lea.vmem [#allocation8], %s211
          %s214 = ssub.s32 512, 512
          %215 = vsyncadd %s209, %s214
          %s216 = smul.addr %s25, 8
          %s217 = sadd.s32 %s26, %s216
          %s218 = smul.addr %s217, 64
          %s219 = scalar_lea.hbm %s3, %s218
          %s220 = sshll.u32 %s212, 4
          %s221 = int_to_ptr.vmem [resolvable:$true] %s220
          %226 = dma.hbm_to_vmem [thread:$0]  %s219, 512, %s221, %s209, 64, 64, 4
        $region32: #{tpu_custom_call.1} parent=27 // pred_fallthru
          _
      $region28: #{tpu_custom_call.1} parent=5 // pred_fallthru
        _
      %p227 = scmp.le.s32.totalorder 1, %s18
      %p228 = scmp.lt.s32.totalorder %s18, 7
      %p229 = pnand %p227, %p228
      %p230 = pneg %p229
      // Predicated region
      $region33: #{tpu_custom_call.1} parent=5 // pred_check
        _
      $region34: #{tpu_custom_call.1} parent=5 // pred_check_branch
        %232 = sbr.rel (%p229) target = $region36
      $region35: #{tpu_custom_call.1} parent=5 // pred_region
        %s233 = ssub.s32 %s18, 1
        // Predicated region
        $region37: #{tpu_custom_call.1} parent=35 // pred_check
          %p234 = pneg %p51
        $region38: #{tpu_custom_call.1} parent=35 // pred_check_branch
          %236 = sbr.rel (%p234) target = $region40
        $region39: #{tpu_custom_call.1} parent=35 // pred_region
          %237 = dma.done [#allocation3], 320
        $region40: #{tpu_custom_call.1} parent=35 // pred_fallthru
          _
        // Predicated region
        $region41: #{tpu_custom_call.1} parent=35 // pred_check
          %p238 = pneg %p72
        $region42: #{tpu_custom_call.1} parent=35 // pred_check_branch
          %240 = sbr.rel (%p238) target = $region44
        $region43: #{tpu_custom_call.1} parent=35 // pred_region
          %241 = dma.done [#allocation6], 320
        $region44: #{tpu_custom_call.1} parent=35 // pred_fallthru
          _
        // Predicated region
        $region45: #{tpu_custom_call.1} parent=35 // pred_check
          %p242 = pneg %p93
        $region46: #{tpu_custom_call.1} parent=35 // pred_check_branch
          %244 = sbr.rel (%p242) target = $region48
        $region47: #{tpu_custom_call.1} parent=35 // pred_region
          %245 = dma.done [#allocation6], 128
        $region48: #{tpu_custom_call.1} parent=35 // pred_fallthru
          _
        %s246 = sand.u32 %s108, 1
        %s247 = scalar_lea.sflag [#allocation9], %s246
        %s248 = sand.u32 %s108, 1
        %s249 = smul.addr %s248, 32
        %s250 = scalar_lea.vmem [#allocation8], %s249
        // Predicated region
        $region49: #{tpu_custom_call.1} parent=35 // pred_check
          %p251 = pneg %p121
        $region50: #{tpu_custom_call.1} parent=35 // pred_check_branch
          %253 = sbr.rel (%p251) target = $region52
        $region51: #{tpu_custom_call.1} parent=35 // pred_region
          %254 = dma.done %s247, 512
        $region52: #{tpu_custom_call.1} parent=35 // pred_fallthru
          _
        %p255 = pneg %p51
        %p256 = pneg %p48
        %p257 = pneg %p72
        %p258 = pneg %p69
        %p259 = pneg %p93
        %p260 = pneg %p90
        %s261 = sand.u32 %s108, 1
        %s262 = scalar_lea.sflag [#allocation9], %s261
        %s263 = sand.u32 %s108, 1
        %s264 = smul.addr %s263, 32
        %s265 = scalar_lea.vmem [#allocation8], %s264
        %p266 = pneg %p121
        %p267 = pneg %p118
        %p268 = pneg %p149
        %p269 = pneg %p146
        %s270 = sand.u32 %s136, 1
        %s271 = scalar_lea.sflag [#allocation4], %s270
        %s272 = sand.u32 %s136, 1
        %s273 = scalar_lea.vmem [#allocation10], %s272
        %v275 = vld [vmem:[%s250] sm:$0xf]
        %v276 = vld [vmem:[%s250 + $0x4] sm:$0xf]
        %v277 = vld [vmem:[%s250 + $0x8] sm:$0xf]
        %v278 = vld [vmem:[%s250 + $0xc] sm:$0xf]
        %v279 = vld [vmem:[%s250 + $0x10] sm:$0xf]
        %v280 = vld [vmem:[%s250 + $0x14] sm:$0xf]
        %v281 = vld [vmem:[%s250 + $0x18] sm:$0xf]
        %v282 = vld [vmem:[%s250 + $0x1c] sm:$0xf]
        %v283 = vld [vmem:[#allocation2] sm:$0xf]
        %v284 = vld [vmem:[#allocation2 + $0x4] sm:$0xf]
        %v285 = vld [vmem:[#allocation2 + $0x8] sm:$0xf]
        %v286 = vld [vmem:[#allocation2 + $0xc] sm:$0xf]
        %v287 = vld [vmem:[#allocation2 + $0x10] sm:$0xf]
        %v293 = vunpack.c.l.b16 %v283
        %v294 = vunpack.c.l.b16 %v284
        %v295 = vunpack.c.l.b16 %v285
        %v296 = vunpack.c.l.b16 %v286
        %v297 = vunpack.c.l.b16 %v287
        %v298 = vpack.c.b16 %v294, %v293
        %v299 = vpack.c.b16 %v296, %v295
        %v300 = vpack.c.b16 %v297, %v297
        %v309 = vunpack.c.l.b16 %v275
        %v310 = vunpack.c.l.b16 %v276
        %v311 = vunpack.c.l.b16 %v277
        %v312 = vunpack.c.l.b16 %v278
        %v313 = vunpack.c.l.b16 %v279
        %v314 = vunpack.c.l.b16 %v280
        %v315 = vunpack.c.l.b16 %v281
        %v316 = vunpack.c.l.b16 %v282
        %v317 = vpack.c.b16 %v310, %v309
        %v318 = vpack.c.b16 %v312, %v311
        %v319 = vpack.c.b16 %v314, %v313
        %v320 = vpack.c.b16 %v316, %v315
        %vm325 = vcmask 523264
        %v327 = vsel %vm325, %v298, 0
        %v330 = vsel %vm325, %v299, 0
        %v333 = vsel %vm325, %v300, 0
        %335 = vmatprep.subr.bf16.mxu0 0
        %336 = vmatpush1.bf16.msra.mxu0 %v317
        %337 = vmatprep.subr.bf16.mxu0 0
        %338 = vmatpush1.bf16.msra.mxu0 %v318
        %339 = vmatprep.subr.bf16.mxu0 0
        %340 = vmatpush1.bf16.msra.mxu0 %v319
        %341 = vmatprep.subr.bf16.mxu0 0
        %342 = vmatpush1.bf16.msra.mxu0 %v320
        %343 = vmatprep.subr.bf16.mxu0 0
        %344 = vmatpush1.bf16.msra.mxu0 0
        %345 = vmatprep.subr.bf16.mxu0 0
        %346 = vmatpush1.bf16.msra.mxu0 0
        %347 = vmatprep.subr.bf16.mxu0 0
        %348 = vmatpush1.bf16.msra.mxu0 0
        %349 = vmatprep.subr.bf16.mxu0 0
        %350 = vmatpush1.bf16.msra.mxu0 0
        %351 = vmatprep.subr.bf16.mxu0 0
        %352 = vmatpush1.bf16.msra.mxu0 0
        %353 = vmatprep.subr.bf16.mxu0 0
        %354 = vmatpush1.bf16.msra.mxu0 0
        %355 = vmatprep.subr.bf16.mxu0 0
        %356 = vmatpush1.bf16.msra.mxu0 0
        %357 = vmatprep.subr.bf16.mxu0 0
        %358 = vmatpush1.bf16.msra.mxu0 0
        %359 = vmatprep.subr.bf16.mxu0 0
        %360 = vmatpush1.bf16.msra.mxu0 0
        %361 = vmatprep.subr.bf16.mxu0 0
        %362 = vmatpush1.bf16.msra.mxu0 0
        %363 = vmatprep.subr.bf16.mxu0 0
        %364 = vmatpush1.bf16.msra.mxu0 0
        %365 = vmatprep.subr.bf16.mxu0 0
        %366 = vmatpush1.bf16.msra.mxu0 0
        %367 = vmatprep.mubr.bf16.mxu0 0
        %368 = vmatmul.mubr.bf16.gmra.mrb[0].mxu0 %v327
        %v369 = vpop.f32.mrb[0].mxu0
        %v370 = vadd.f32 0.0, %v369
        %v371 = vpop.f32.mrb[0].mxu0
        %v372 = vpop.f32.mrb[0].mxu0
        %v373 = vadd.f32 0.0, %v372
        %v374 = vpop.f32.mrb[0].mxu0
        %375 = vmatprep.mubr.bf16.mxu0 0
        %376 = vmatmul.mubr.bf16.gmra.mrb[0].mxu0 %v330
        %v377 = vpop.f32.mrb[0].mxu0
        %v378 = vadd.f32 0.0, %v377
        %v379 = vpop.f32.mrb[0].mxu0
        %v380 = vpop.f32.mrb[0].mxu0
        %v381 = vadd.f32 0.0, %v380
        %v382 = vpop.f32.mrb[0].mxu0
        %383 = vmatprep.mubr.bf16.mxu0 0
        %384 = vmatmul.mubr.bf16.gmra.mrb[0].mxu0 %v333
        %v385 = vpop.f32.mrb[0].mxu0
        %v386 = vadd.f32 0.0, %v385
        %v387 = vpop.f32.mrb[0].mxu0
        %v388 = vpop.f32.mrb[0].mxu0
        %v389 = vpop.f32.mrb[0].mxu0
        %390 = vdwg.mxu0
        %v391 = vld [vmem:[#allocation5] sm:$0xf]
        %v392 = vld [vmem:[#allocation5 + $0x4] sm:$0xf]
        %v393 = vld [vmem:[#allocation5 + $0x8] sm:$0xf]
        %v394 = vld [vmem:[#allocation5 + $0xc] sm:$0xf]
        %v395 = vld [vmem:[#allocation5 + $0x10] sm:$0xf]
        %v401 = vunpack.c.l.b16 %v391
        %v402 = vunpack.c.l.b16 %v392
        %v403 = vunpack.c.l.b16 %v393
        %v404 = vunpack.c.l.b16 %v394
        %v405 = vunpack.c.l.b16 %v395
        %v406 = vpack.c.b16 %v402, %v401
        %v407 = vpack.c.b16 %v404, %v403
        %v408 = vpack.c.b16 %v405, %v405
        %v410 = vsel %vm325, %v406, 0
        %v413 = vsel %vm325, %v407, 0
        %v416 = vsel %vm325, %v408, 0
        %418 = vmatprep.subr.bf16.mxu0 0
        %419 = vmatpush1.bf16.msra.mxu0 %v317
        %420 = vmatprep.subr.bf16.mxu0 0
        %421 = vmatpush1.bf16.msra.mxu0 %v318
        %422 = vmatprep.subr.bf16.mxu0 0
        %423 = vmatpush1.bf16.msra.mxu0 %v319
        %424 = vmatprep.subr.bf16.mxu0 0
        %425 = vmatpush1.bf16.msra.mxu0 %v320
        %426 = vmatprep.subr.bf16.mxu0 0
        %427 = vmatpush1.bf16.msra.mxu0 0
        %428 = vmatprep.subr.bf16.mxu0 0
        %429 = vmatpush1.bf16.msra.mxu0 0
        %430 = vmatprep.subr.bf16.mxu0 0
        %431 = vmatpush1.bf16.msra.mxu0 0
        %432 = vmatprep.subr.bf16.mxu0 0
        %433 = vmatpush1.bf16.msra.mxu0 0
        %434 = vmatprep.subr.bf16.mxu0 0
        %435 = vmatpush1.bf16.msra.mxu0 0
        %436 = vmatprep.subr.bf16.mxu0 0
        %437 = vmatpush1.bf16.msra.mxu0 0
        %438 = vmatprep.subr.bf16.mxu0 0
        %439 = vmatpush1.bf16.msra.mxu0 0
        %440 = vmatprep.subr.bf16.mxu0 0
        %441 = vmatpush1.bf16.msra.mxu0 0
        %442 = vmatprep.subr.bf16.mxu0 0
        %443 = vmatpush1.bf16.msra.mxu0 0
        %444 = vmatprep.subr.bf16.mxu0 0
        %445 = vmatpush1.bf16.msra.mxu0 0
        %446 = vmatprep.subr.bf16.mxu0 0
        %447 = vmatpush1.bf16.msra.mxu0 0
        %448 = vmatprep.subr.bf16.mxu0 0
        %449 = vmatpush1.bf16.msra.mxu0 0
        %450 = vmatprep.mubr.bf16.mxu0 0
        %451 = vmatmul.mubr.bf16.gmra.mrb[0].mxu0 %v410
        %v452 = vpop.f32.mrb[0].mxu0
        %v453 = vadd.f32 0.0, %v452
        %v454 = vpop.f32.mrb[0].mxu0
        %v455 = vpop.f32.mrb[0].mxu0
        %v456 = vadd.f32 0.0, %v455
        %v457 = vpop.f32.mrb[0].mxu0
        %458 = vmatprep.mubr.bf16.mxu0 0
        %459 = vmatmul.mubr.bf16.gmra.mrb[0].mxu0 %v413
        %v460 = vpop.f32.mrb[0].mxu0
        %v461 = vadd.f32 0.0, %v460
        %v462 = vpop.f32.mrb[0].mxu0
        %v463 = vpop.f32.mrb[0].mxu0
        %v464 = vadd.f32 0.0, %v463
        %v465 = vpop.f32.mrb[0].mxu0
        %466 = vmatprep.mubr.bf16.mxu0 0
        %467 = vmatmul.mubr.bf16.gmra.mrb[0].mxu0 %v416
        %v468 = vpop.f32.mrb[0].mxu0
        %v469 = vadd.f32 0.0, %v468
        %v470 = vpop.f32.mrb[0].mxu0
        %v471 = vpop.f32.mrb[0].mxu0
        %v472 = vpop.f32.mrb[0].mxu0
        %473 = vdwg.mxu0
        %v474 = vmul.f32 %v370, %v370
        %v475 = vmul.f32 %v373, %v373
        %v476 = vmul.f32 %v378, %v378
        %v477 = vmul.f32 %v381, %v381
        %v478 = vmul.f32 %v386, %v386
        %v479 = vmul.f32 %v453, %v453
        %v480 = vmul.f32 %v456, %v456
        %v481 = vmul.f32 %v461, %v461
        %v482 = vmul.f32 %v464, %v464
        %v483 = vmul.f32 %v469, %v469
        %v484 = vadd.f32 %v474, %v479
        %v485 = vadd.f32 %v475, %v480
        %v486 = vadd.f32 %v476, %v481
        %v487 = vadd.f32 %v477, %v482
        %v488 = vadd.f32 %v478, %v483
        %v489 = vrsqrt.pop %v484
        %v490 = vmul.f32 %v484, %v489
        %vm491 = vcmp.eq.f32.partialorder %v484, inf
        %v492 = vsel %vm491, %v484, %v490
        %vm493 = vcmp.eq.f32.partialorder %v484, 0.0
        %v494 = vand.u32 %v484, 2147483648
        %v495 = vsel %vm493, %v494, %v492
        %v496 = vrsqrt.pop %v485
        %v497 = vmul.f32 %v485, %v496
        %vm498 = vcmp.eq.f32.partialorder %v485, inf
        %v499 = vsel %vm498, %v485, %v497
        %vm500 = vcmp.eq.f32.partialorder %v485, 0.0
        %v501 = vand.u32 %v485, 2147483648
        %v502 = vsel %vm500, %v501, %v499
        %v503 = vrsqrt.pop %v486
        %v504 = vmul.f32 %v486, %v503
        %vm505 = vcmp.eq.f32.partialorder %v486, inf
        %v506 = vsel %vm505, %v486, %v504
        %vm507 = vcmp.eq.f32.partialorder %v486, 0.0
        %v508 = vand.u32 %v486, 2147483648
        %v509 = vsel %vm507, %v508, %v506
        %v510 = vrsqrt.pop %v487
        %v511 = vmul.f32 %v487, %v510
        %vm512 = vcmp.eq.f32.partialorder %v487, inf
        %v513 = vsel %vm512, %v487, %v511
        %vm514 = vcmp.eq.f32.partialorder %v487, 0.0
        %v515 = vand.u32 %v487, 2147483648
        %v516 = vsel %vm514, %v515, %v513
        %v517 = vrsqrt.pop %v488
        %v518 = vmul.f32 %v488, %v517
        %vm519 = vcmp.eq.f32.partialorder %v488, inf
        %v520 = vsel %vm519, %v488, %v518
        %vm521 = vcmp.eq.f32.partialorder %v488, 0.0
        %v522 = vand.u32 %v488, 2147483648
        %v523 = vsel %vm521, %v522, %v520
        %v524 = vld [vmem:[#allocation7] sm:$0xff]
        %vm525 = vcmask 326656
        %v527 = vsel %vm525, %v524, 0
        %529 = vmatprep.subr.mxu0 0.0
        %530 = vmatpush1.msra.mxu0 %v495
        %531 = vmatprep.subr.mxu0 0.0
        %532 = vmatpush1.msra.mxu0 %v502
        %533 = vmatprep.subr.mxu0 0.0
        %534 = vmatpush1.msra.mxu0 %v509
        %535 = vmatprep.subr.mxu0 0.0
        %536 = vmatpush1.msra.mxu0 %v516
        %537 = vmatprep.subr.mxu0 0.0
        %538 = vmatpush1.msra.mxu0 %v523
        %539 = vmatprep.subr.mxu0 0.0
        %540 = vmatpush1.msra.mxu0 0.0
        %541 = vmatprep.subr.mxu0 0.0
        %542 = vmatpush1.msra.mxu0 0.0
        %543 = vmatprep.subr.mxu0 0.0
        %544 = vmatpush1.msra.mxu0 0.0
        %545 = vmatprep.subr.mxu0 0.0
        %546 = vmatpush1.msra.mxu0 0.0
        %547 = vmatprep.subr.mxu0 0.0
        %548 = vmatpush1.msra.mxu0 0.0
        %549 = vmatprep.subr.mxu0 0.0
        %550 = vmatpush1.msra.mxu0 0.0
        %551 = vmatprep.subr.mxu0 0.0
        %552 = vmatpush1.msra.mxu0 0.0
        %553 = vmatprep.subr.mxu0 0.0
        %554 = vmatpush1.msra.mxu0 0.0
        %555 = vmatprep.subr.mxu0 0.0
        %556 = vmatpush1.msra.mxu0 0.0
        %557 = vmatprep.subr.mxu0 0.0
        %558 = vmatpush1.msra.mxu0 0.0
        %559 = vmatprep.subr.mxu0 0.0
        %560 = vmatpush1.msra.mxu0 0.0
        %561 = vmatprep.subr.mxu0 0.0
        %562 = vmatpush1.msra.mxu0 0.0
        %563 = vmatprep.subr.mxu0 0.0
        %564 = vmatpush1.msra.mxu0 0.0
        %565 = vmatprep.subr.mxu0 0.0
        %566 = vmatpush1.msra.mxu0 0.0
        %567 = vmatprep.subr.mxu0 0.0
        %568 = vmatpush1.msra.mxu0 0.0
        %569 = vmatprep.subr.mxu0 0.0
        %570 = vmatpush1.msra.mxu0 0.0
        %571 = vmatprep.subr.mxu0 0.0
        %572 = vmatpush1.msra.mxu0 0.0
        %573 = vmatprep.subr.mxu0 0.0
        %574 = vmatpush1.msra.mxu0 0.0
        %575 = vmatprep.subr.mxu0 0.0
        %576 = vmatpush1.msra.mxu0 0.0
        %577 = vmatprep.subr.mxu0 0.0
        %578 = vmatpush1.msra.mxu0 0.0
        %579 = vmatprep.subr.mxu0 0.0
        %580 = vmatpush1.msra.mxu0 0.0
        %581 = vmatprep.subr.mxu0 0.0
        %582 = vmatpush1.msra.mxu0 0.0
        %583 = vmatprep.subr.mxu0 0.0
        %584 = vmatpush1.msra.mxu0 0.0
        %585 = vmatprep.subr.mxu0 0.0
        %586 = vmatpush1.msra.mxu0 0.0
        %587 = vmatprep.subr.mxu0 0.0
        %588 = vmatpush1.msra.mxu0 0.0
        %589 = vmatprep.subr.mxu0 0.0
        %590 = vmatpush1.msra.mxu0 0.0
        %591 = vmatprep.subr.mxu0 0.0
        %592 = vmatpush1.msra.mxu0 0.0
        %593 = vmatprep.mubr.f32.mxu0 0.0
        %594 = vmatmul.mubr.f32.gmra.mrb[0].mxu0 %v527
        %v595 = vpop.f32.mrb[0].mxu0
        %v596 = vadd.f32 0.0, %v595
        %v597 = vpop.f32.mrb[0].mxu0
        %598 = vdwg.mxu0
        %v600 = vrot.slane %v596, 1
        %v602 = vrcp.pop %v600
        %v603 = vmul.f32 %v596, %v602
        %604 = vst [vmem:[%s273] sm:$0x1] %v603
        %s605 = sand.u32 %s136, 1
        %s606 = scalar_lea.sflag [#allocation4], %s605
        %s607 = sand.u32 %s136, 1
        %s608 = scalar_lea.vmem [#allocation10], %s607
        // Predicated region
        $region53: #{tpu_custom_call.1} parent=35 // pred_check
          %p609 = pneg %p146
        $region54: #{tpu_custom_call.1} parent=35 // pred_check_branch
          %611 = sbr.rel (%p609) target = $region56
        $region55: #{tpu_custom_call.1} parent=35 // pred_region
          %s613 = ssub.s32 16, 16
          %614 = vsyncadd %s606, %s613
          %s615 = sadd.s32 %s28, %s27
          %s616 = smul.addr %s615, 16
          %s617 = scalar_lea.hbm %s4, %s616
          %s619 = sshll.u32 %s608, 4
          %s620 = int_to_ptr.vmem [resolvable:$true] %s619
          %622 = dma.vmem_to_hbm [thread:$0]  %s620, 16, %s617, %s606
        $region56: #{tpu_custom_call.1} parent=35 // pred_fallthru
          _
      $region36: #{tpu_custom_call.1} parent=5 // pred_fallthru
        _
      %p623 = scmp.le.s32.totalorder 2, %s18
      // Predicated region
      $region57: #{tpu_custom_call.1} parent=5 // pred_check
        %p624 = pneg %p623
      $region58: #{tpu_custom_call.1} parent=5 // pred_check_branch
        %626 = sbr.rel (%p624) target = $region60
      $region59: #{tpu_custom_call.1} parent=5 // pred_region
        %s627 = ssub.s32 %s18, 2
        // Predicated region
        $region61: #{tpu_custom_call.1} parent=59 // pred_check
          %p628 = pneg %p152
        $region62: #{tpu_custom_call.1} parent=59 // pred_check_branch
          %630 = sbr.rel (%p628) target = $region64
        $region63: #{tpu_custom_call.1} parent=59 // pred_region
          %s631 = sand.u32 %s137, 1
          %s632 = scalar_lea.sflag [#allocation4], %s631
          %s633 = sand.u32 %s137, 1
          %s634 = scalar_lea.vmem [#allocation10], %s633
          %635 = dma.done %s632, 16
        $region64: #{tpu_custom_call.1} parent=59 // pred_fallthru
          _
      $region60: #{tpu_custom_call.1} parent=5 // pred_fallthru
        _
    $region6: #{tpu_custom_call.1} parent=1 // loop_footer
      %s22 = sadd.s32 1, %s18
    $region7: #{tpu_custom_call.1} parent=1 // loop_footer_branch
      %17 = sbr.rel target = $region3
    $region8: #{tpu_custom_call.1} parent=1 // loop_exit
      _
    %636 = vsyncpa [#allocation3], 1
    %s637 = scalar_lea.sflag [#allocation3], 1
    %638 = vsyncpa %s637, 1
    %639 = vsyncpa [#allocation6], 1
    %640 = vsyncpa [#allocation9], 1
    %s641 = scalar_lea.sflag [#allocation9], 1
    %642 = vsyncpa %s641, 1
    %643 = vsyncpa [#allocation4], 1
    %s644 = scalar_lea.sflag [#allocation4], 1
    %645 = vsyncpa %s644, 1

</llo_original>
